<compile_context>
chip_gen: v7x
topology: tpu7x:2x2x1
jax: 0.10.0
libtpu: 0.0.40
codegen_flags: <defaults>
</compile_context>

<pallas_src>
from functools import partial

import jax
import jax.numpy as jnp
from jax.experimental import pallas as pl
from jax.experimental.pallas import tpu as pltpu


def _cdiv(a, b):
    return -(-a // b)


def _round_up(a, b):
    return _cdiv(a, b) * b


def _vmem_capacity_bytes(default=64 * 1024 * 1024):
    try:
        cap = getattr(pltpu.get_tpu_info(), "vmem_capacity_bytes", None)
        if cap:
            return int(cap)
    except Exception:
        pass
    return default


def _attn_kernel(membq_ref, membEN_ref, q_ref, kUT_ref, kET_ref, vU_ref,
                 out_ref, *, matmul_dtype):
    """One (head, query-row-tile) step of the factored masked softmax."""
    f32 = jnp.float32
    md = matmul_dtype

    q = q_ref[...]                       # [tq, dh]  pre-scaled, +bq, head h
    kUT = kUT_ref[...]                   # [dh, N]   node keys (transposed)
    kET = kET_ref[...]                   # [dh, E]   edge keys (transposed)
    vU = vU_ref[...]                     # [N, dh]   node values
    memb_EN = membEN_ref[...]            # [E, N]    0/1 mask, matmul dtype
    memb_q = membq_ref[...].astype(f32)  # [tq, E]   0/1 mask rows of this tile

    # score(v, e, u) = q[v].(kU[u] + kE[e]) = A[v, u] + B[v, e]
    A = jnp.dot(q, kUT, preferred_element_type=f32)            # [tq, N]
    B = jnp.dot(q, kET, preferred_element_type=f32)            # [tq, E]

    NEG = jnp.float32(-1e30)

    # edge factor: masked max over member edges; exponent clamped at 0, which is
    # exact (valid entries are <= their masked max, invalid ones get masked out).
    mB = jnp.max(jnp.where(memb_q > 0.0, B, NEG), axis=1, keepdims=True)
    mB = jnp.where(mB > 0.5 * NEG, mB, 0.0)
    C = jnp.exp(jnp.minimum(B - mB, 0.0)) * memb_q             # [tq, E]

    # G[v, u] = sum_e memb[v,e] * exp(B[v,e]-mB[v]) * memb[u,e]; its support is
    # exactly the valid (v, u) pair set, so no separate validity matmul needed.
    G = jnp.dot(C.astype(md), memb_EN, preferred_element_type=f32)   # [tq, N]
    valid_u = G > 0.0

    mA = jnp.max(jnp.where(valid_u, A, NEG), axis=1, keepdims=True)
    mA = jnp.where(mA > 0.5 * NEG, mA, 0.0)
    P = jnp.exp(jnp.minimum(A - mA, 0.0)) * G                  # [tq, N]

    denom = jnp.maximum(jnp.sum(P, axis=1, keepdims=True), jnp.float32(1e-30))
    inv = pl.reciprocal(denom, approx=True)                    # EUP
    inv = inv * (2.0 - denom * inv)                            # one Newton step

    oh = jnp.dot(P.astype(md), vU, preferred_element_type=f32) * inv   # [tq, dh]
    out_ref[...] = oh.astype(out_ref.dtype)


def hyper_semantic_mp(x, incidence, edge_attr, params, *, num_heads,
                      row_tile=None, matmul_dtype=jnp.float32):
    """Forward pass of CustomHyperSemanticMessagePassing.

    x: [N, in_dim], incidence: [E, N], edge_attr: [E, edge_dim].
    Returns relu(attn_out @ wo + bo), shape [N, out_dim].
    matmul_dtype=jnp.bfloat16 is the recommended production setting on v6e/v7x
    (operands bf16, all softmax math / accumulation stays f32).
    """
    N, in_dim = x.shape
    E, edge_dim = edge_attr.shape
    D = params["wlin"].shape[1]
    assert D % num_heads == 0
    dh = D // num_heads
    f32 = jnp.float32
    md = matmul_dtype

    # ---- generation-aware tiling / VMEM budget ------------------------------
    cap = _vmem_capacity_bytes()
    base_tile = 256 if cap >= 96 * 1024 * 1024 else 128   # v5e/v6e vs v7x
    n8 = _round_up(max(N, 8), 8)
    if row_tile is None:
        ntiles = _cdiv(n8, base_tile)
        row_tile = _round_up(_cdiv(n8, ntiles), 8)        # minimal padding
    N_pad = _round_up(max(N, row_tile), row_tile)
    vmem_limit = min(int(cap * 0.75), 100 * 1024 * 1024)

    if N_pad != N:
        x = jnp.pad(x, ((0, N_pad - N), (0, 0)))
        incidence = jnp.pad(incidence, ((0, 0), (0, N_pad - N)))

    # ---- XLA prologue: all head/row-invariant projections, done exactly once
    Wh = x @ params["wlin"]                               # [N_pad, D]
    We = edge_attr @ params["wedge"]                      # [E, D]
    scale = 1.0 / float(dh) ** 0.5
    q = (Wh @ params["wq"] + params["bq"]) * scale        # [N_pad, D] (scale folded)
    kU = Wh @ params["wk"]                                # [N_pad, D]
    kE = We @ params["wk"] + params["bk"]                 # [E, D]
    vU = Wh @ params["wv"] + params["bv"]                 # [N_pad, D]

    # head-major, pre-transposed so every in-kernel dot is a natural MXU matmul
    q_h = q.reshape(N_pad, num_heads, dh).transpose(1, 0, 2).astype(md)   # [H,N,dh]
    kUT = kU.reshape(N_pad, num_heads, dh).transpose(1, 2, 0).astype(md)  # [H,dh,N]
    kET = kE.reshape(E, num_heads, dh).transpose(1, 2, 0).astype(md)      # [H,dh,E]
    vU_h = vU.reshape(N_pad, num_heads, dh).transpose(1, 0, 2).astype(md) # [H,N,dh]

    # 0/1 membership mask, precomputed in the matmul dtype, both orientations
    memb_NE = (incidence.T != 0).astype(md)               # [N_pad, E] (row blocks)
    memb_EN = (incidence != 0).astype(md)                 # [E, N_pad] (resident)

    # head axis OUTER -> per-head K/V blocks stay resident across all row tiles
    grid = (num_heads, N_pad // row_tile)
    head_only = lambda h, i: (h, 0, 0)

    in_specs = [
        pl.BlockSpec((row_tile, E), lambda h, i: (i, 0)),            # mask rows
        pl.BlockSpec((E, N_pad), lambda h, i: (0, 0)),               # mask (resident)
        pl.BlockSpec((None, row_tile, dh), lambda h, i: (h, i, 0)),  # q tile
        pl.BlockSpec((None, dh, N_pad), head_only),                  # kU^T
        pl.BlockSpec((None, dh, E), head_only),                      # kE^T
        pl.BlockSpec((None, N_pad, dh), head_only),                  # vU
    ]
    out_spec = pl.BlockSpec((None, row_tile, dh), lambda h, i: (h, i, 0))

    heads_out = pl.pallas_call(
        partial(_attn_kernel, matmul_dtype=md),
        out_shape=jax.ShapeDtypeStruct((num_heads, N_pad, dh), f32),
        grid_spec=pltpu.PrefetchScalarGridSpec(
            num_scalar_prefetch=0,
            grid=grid,
            in_specs=in_specs,
            out_specs=out_spec,
        ),
        compiler_params=pltpu.CompilerParams(
            dimension_semantics=("parallel", "parallel"),
            vmem_limit_bytes=vmem_limit,
        ),
    )(memb_NE, memb_EN, q_h, kUT, kET, vU_h)

    # ---- epilogue: ONE K = D output projection (+bias, relu) ----------------
    # (single dense matmul instead of H under-utilized K=dh GEMMs + RMW passes)
    wo_h = params["wo"].reshape(num_heads, dh, D)
    o = jnp.einsum("hnd,hdo->no", heads_out[:, :N, :], wo_h) + params["bo"][None, :]
    return jax.nn.relu(o)


def reference_forward(x, incidence, edge_attr, params, *, num_heads):
    """Pure-JAX reference matching the PyTorch padded-MHA semantics."""
    Wh = x @ params["wlin"]
    We = edge_attr @ params["wedge"]
    q = Wh @ params["wq"] + params["bq"]
    kU = Wh @ params["wk"]
    kE = We @ params["wk"] + params["bk"]
    vU = Wh @ params["wv"] + params["bv"]
    N, D = Wh.shape
    E = We.shape[0]
    dh = D // num_heads
    scale = 1.0 / float(dh) ** 0.5
    mask = (incidence.T[:, :, None] != 0) & (incidence[None, :, :] != 0)  # [N,E,N]
    outs = []
    for h in range(num_heads):
        sl = slice(h * dh, (h + 1) * dh)
        A = (q[:, sl] @ kU[:, sl].T) * scale          # [N, N]
        B = (q[:, sl] @ kE[:, sl].T) * scale          # [N, E]
        s = A[:, None, :] + B[:, :, None]             # [N, E, N]
        s = jnp.where(mask, s, -jnp.inf)
        p = jax.nn.softmax(s.reshape(N, E * N), axis=-1).reshape(N, E, N)
        outs.append(p.sum(axis=1) @ vU[:, sl])        # [N, dh]
    o = jnp.concatenate(outs, axis=-1) @ params["wo"] + params["bo"]
    return jax.nn.relu(o)


if __name__ == "__main__":
    def make_inputs(key, N, E, in_dim, edge_dim, out_dim):
        ks = jax.random.split(key, 12)
        x = jax.random.normal(ks[0], (N, in_dim), jnp.float32)
        edge_attr = jax.random.normal(ks[1], (E, edge_dim), jnp.float32)
        incidence = (jax.random.uniform(ks[2], (E, N)) < 0.3).astype(jnp.float32)
        # ensure every node belongs to at least one hyperedge (matches what the
        # PyTorch module can handle without NaN)
        incidence = incidence.at[jnp.arange(N) % E, jnp.arange(N)].set(1.0)

        def _w(k, shape, fan_in):
            return jax.random.normal(k, shape, jnp.float32) * (1.0 / fan_in ** 0.5)

        params = {
            "wlin": _w(ks[3], (in_dim, out_dim), in_dim),
            "wedge": _w(ks[4], (edge_dim, out_dim), edge_dim),
            "wq": _w(ks[5], (out_dim, out_dim), out_dim),
            "wk": _w(ks[6], (out_dim, out_dim), out_dim),
            "wv": _w(ks[7], (out_dim, out_dim), out_dim),
            "bq": _w(ks[8], (out_dim,), out_dim),
            "bk": _w(ks[9], (out_dim,), out_dim),
            "bv": _w(ks[10], (out_dim,), out_dim),
            "wo": _w(ks[11], (out_dim, out_dim), out_dim),
            "bo": jnp.zeros((out_dim,), jnp.float32),
        }
        return x, edge_attr, incidence, params

    k1, k2 = jax.random.split(jax.random.PRNGKey(0))

    # config 1: small shapes, single row tile
    N, E, in_dim, edge_dim, out_dim, num_heads = 16, 8, 8, 4, 32, 4
    x, ea, inc, params = make_inputs(k1, N, E, in_dim, edge_dim, out_dim)
    out = jax.block_until_ready(
        hyper_semantic_mp(x, inc, ea, params, num_heads=num_heads))
    ref = reference_forward(x, inc, ea, params, num_heads=num_heads)
    assert out.shape == (N, out_dim)
    assert bool(jnp.all(jnp.isfinite(out)))
    assert bool(jnp.allclose(out, ref, atol=2e-3, rtol=2e-3)), (
        f"max abs diff {float(jnp.max(jnp.abs(out - ref)))}")

    # config 2: multiple row tiles + row padding
    N, E, in_dim, edge_dim, out_dim, num_heads = 300, 32, 16, 8, 64, 8
    x, ea, inc, params = make_inputs(k2, N, E, in_dim, edge_dim, out_dim)
    out = jax.block_until_ready(
        hyper_semantic_mp(x, inc, ea, params, num_heads=num_heads))
    ref = reference_forward(x, inc, ea, params, num_heads=num_heads)
    assert out.shape == (N, out_dim)
    assert bool(jnp.all(jnp.isfinite(out)))
    assert bool(jnp.allclose(out, ref, atol=2e-3, rtol=2e-3)), (
        f"max abs diff {float(jnp.max(jnp.abs(out - ref)))}")

    # bf16 matmul operands (recommended on v6e/v7x), f32 softmax/accumulation;
    # loose tolerance only because the operands are bf16.
    out_bf16 = jax.block_until_ready(
        hyper_semantic_mp(x, inc, ea, params, num_heads=num_heads,
                          matmul_dtype=jnp.bfloat16))
    assert bool(jnp.all(jnp.isfinite(out_bf16)))
    assert bool(jnp.allclose(out_bf16, ref, atol=0.25, rtol=0.25))

    print("KERNEL_OK")
</pallas_src>

<mosaic_0001>
module attributes {stable_mosaic.version = 11 : i64} {
  func.func @_attn_kernel(%arg0: i32, %arg1: i32, %arg2: memref<16x8xf32, #tpu.memory_space<vmem>>, %arg3: memref<8x16xf32, #tpu.memory_space<vmem>>, %arg4: memref<1x16x8xf32, #tpu.memory_space<vmem>>, %arg5: memref<1x8x16xf32, #tpu.memory_space<vmem>>, %arg6: memref<1x8x8xf32, #tpu.memory_space<vmem>>, %arg7: memref<1x16x8xf32, #tpu.memory_space<vmem>>, %arg8: memref<1x16x8xf32, #tpu.memory_space<vmem>>) attributes {dimension_semantics = [#tpu.dimension_semantics<parallel>, #tpu.dimension_semantics<parallel>], iteration_bounds = array<i64: 4, 1>, scalar_prefetch = 0 : i64, scratch_operands = 0 : i64, tpu.core_type = #tpu.core_type<tc>, window_params = [{transform_indices = @transform_0, window_bounds = array<i64: 16, 8>}, {pipeline_mode = #tpu.pipeline_mode<synchronous>, transform_indices = @transform_1, window_bounds = array<i64: 8, 16>}, {transform_indices = @transform_2, window_bounds = array<i64: 1, 16, 8>}, {transform_indices = @transform_3, window_bounds = array<i64: 1, 8, 16>}, {transform_indices = @transform_4, window_bounds = array<i64: 1, 8, 8>}, {transform_indices = @transform_5, window_bounds = array<i64: 1, 16, 8>}, {transform_indices = @transform_6, window_bounds = array<i64: 1, 16, 8>}]} {
    %c0 = arith.constant 0 : index
    %c0_0 = arith.constant 0 : index
    %c0_1 = arith.constant 0 : index
    %0 = vector.load %arg4[%c0, %c0_0, %c0_1] : memref<1x16x8xf32, #tpu.memory_space<vmem>>, vector<1x16x8xf32>
    %1 = vector.shape_cast %0 : vector<1x16x8xf32> to vector<16x8xf32>
    %c0_2 = arith.constant 0 : index
    %c0_3 = arith.constant 0 : index
    %c0_4 = arith.constant 0 : index
    %2 = vector.load %arg5[%c0_2, %c0_3, %c0_4] : memref<1x8x16xf32, #tpu.memory_space<vmem>>, vector<1x8x16xf32>
    %3 = vector.shape_cast %2 : vector<1x8x16xf32> to vector<8x16xf32>
    %c0_5 = arith.constant 0 : index
    %c0_6 = arith.constant 0 : index
    %c0_7 = arith.constant 0 : index
    %4 = vector.load %arg6[%c0_5, %c0_6, %c0_7] : memref<1x8x8xf32, #tpu.memory_space<vmem>>, vector<1x8x8xf32>
    %5 = vector.shape_cast %4 : vector<1x8x8xf32> to vector<8x8xf32>
    %c0_8 = arith.constant 0 : index
    %c0_9 = arith.constant 0 : index
    %c0_10 = arith.constant 0 : index
    %6 = vector.load %arg7[%c0_8, %c0_9, %c0_10] : memref<1x16x8xf32, #tpu.memory_space<vmem>>, vector<1x16x8xf32>
    %7 = vector.shape_cast %6 : vector<1x16x8xf32> to vector<16x8xf32>
    %c0_11 = arith.constant 0 : index
    %c0_12 = arith.constant 0 : index
    %8 = vector.load %arg3[%c0_11, %c0_12] : memref<8x16xf32, #tpu.memory_space<vmem>>, vector<8x16xf32>
    %c0_13 = arith.constant 0 : index
    %c0_14 = arith.constant 0 : index
    %9 = vector.load %arg2[%c0_13, %c0_14] : memref<16x8xf32, #tpu.memory_space<vmem>>, vector<16x8xf32>
    %cst = arith.constant dense<0.000000e+00> : vector<16x16xf32>
    %10 = tpu.matmul %1, %3, %cst {dimension_numbers = #tpu.dot_dimension_numbers<[1], [0], [0], [1], [0, 0, 1, 1], [], []>} : vector<16x8xf32>, vector<8x16xf32>, vector<16x16xf32> -> vector<16x16xf32>
    %cst_15 = arith.constant dense<0.000000e+00> : vector<16x8xf32>
    %11 = tpu.matmul %1, %5, %cst_15 {dimension_numbers = #tpu.dot_dimension_numbers<[1], [0], [0], [1], [0, 0, 1, 1], [], []>} : vector<16x8xf32>, vector<8x8xf32>, vector<16x8xf32> -> vector<16x8xf32>
    %cst_16 = arith.constant 0.000000e+00 : f32
    %12 = vector.broadcast %cst_16 : f32 to vector<16x8xf32>
    %13 = arith.cmpf ogt, %9, %12 : vector<16x8xf32>
    %cst_17 = arith.constant -1.000000e+30 : f32
    %14 = vector.broadcast %cst_17 : f32 to vector<16x8xf32>
    %15 = arith.select %13, %11, %14 : vector<16x8xi1>, vector<16x8xf32>
    %cst_18 = arith.constant dense<0xFF800000> : vector<16xf32>
    %16 = vector.multi_reduction <maximumf>, %15, %cst_18 [1] : vector<16x8xf32> to vector<16xf32>
    %17 = vector.shape_cast %16 : vector<16xf32> to vector<16x1xf32>
    %cst_19 = arith.constant 5.000000e-01 : f32
    %cst_20 = arith.constant -1.000000e+30 : f32
    %18 = arith.mulf %cst_19, %cst_20 : f32
    %19 = vector.broadcast %18 : f32 to vector<16x1xf32>
    %20 = arith.cmpf ogt, %17, %19 : vector<16x1xf32>
    %cst_21 = arith.constant 0.000000e+00 : f32
    %21 = vector.broadcast %cst_21 : f32 to vector<16x1xf32>
    %22 = arith.select %20, %17, %21 : vector<16x1xi1>, vector<16x1xf32>
    %23 = vector.broadcast %22 : vector<16x1xf32> to vector<16x8xf32>
    %24 = arith.subf %11, %23 : vector<16x8xf32>
    %cst_22 = arith.constant 0.000000e+00 : f32
    %25 = vector.broadcast %cst_22 : f32 to vector<16x8xf32>
    %26 = arith.minimumf %24, %25 : vector<16x8xf32>
    %27 = math.exp %26 : vector<16x8xf32>
    %28 = arith.mulf %27, %9 : vector<16x8xf32>
    %cst_23 = arith.constant dense<0.000000e+00> : vector<16x16xf32>
    %29 = tpu.matmul %28, %8, %cst_23 {dimension_numbers = #tpu.dot_dimension_numbers<[1], [0], [0], [1], [0, 0, 1, 1], [], []>} : vector<16x8xf32>, vector<8x16xf32>, vector<16x16xf32> -> vector<16x16xf32>
    %cst_24 = arith.constant 0.000000e+00 : f32
    %30 = vector.broadcast %cst_24 : f32 to vector<16x16xf32>
    %31 = arith.cmpf ogt, %29, %30 : vector<16x16xf32>
    %cst_25 = arith.constant -1.000000e+30 : f32
    %32 = vector.broadcast %cst_25 : f32 to vector<16x16xf32>
    %33 = arith.select %31, %10, %32 : vector<16x16xi1>, vector<16x16xf32>
    %cst_26 = arith.constant dense<0xFF800000> : vector<16xf32>
    %34 = vector.multi_reduction <maximumf>, %33, %cst_26 [1] : vector<16x16xf32> to vector<16xf32>
    %35 = vector.shape_cast %34 : vector<16xf32> to vector<16x1xf32>
    %cst_27 = arith.constant 5.000000e-01 : f32
    %cst_28 = arith.constant -1.000000e+30 : f32
    %36 = arith.mulf %cst_27, %cst_28 : f32
    %37 = vector.broadcast %36 : f32 to vector<16x1xf32>
    %38 = arith.cmpf ogt, %35, %37 : vector<16x1xf32>
    %cst_29 = arith.constant 0.000000e+00 : f32
    %39 = vector.broadcast %cst_29 : f32 to vector<16x1xf32>
    %40 = arith.select %38, %35, %39 : vector<16x1xi1>, vector<16x1xf32>
    %41 = vector.broadcast %40 : vector<16x1xf32> to vector<16x16xf32>
    %42 = arith.subf %10, %41 : vector<16x16xf32>
    %cst_30 = arith.constant 0.000000e+00 : f32
    %43 = vector.broadcast %cst_30 : f32 to vector<16x16xf32>
    %44 = arith.minimumf %42, %43 : vector<16x16xf32>
    %45 = math.exp %44 : vector<16x16xf32>
    %46 = arith.mulf %45, %29 : vector<16x16xf32>
    %cst_31 = arith.constant dense<0.000000e+00> : vector<16xf32>
    %47 = vector.multi_reduction <add>, %46, %cst_31 [1] : vector<16x16xf32> to vector<16xf32>
    %48 = vector.shape_cast %47 : vector<16xf32> to vector<16x1xf32>
    %cst_32 = arith.constant 1.000000e-30 : f32
    %49 = vector.broadcast %cst_32 : f32 to vector<16x1xf32>
    %50 = arith.maximumf %48, %49 : vector<16x1xf32>
    %51 = tpu.reciprocal %50 {approx = true} : vector<16x1xf32> -> vector<16x1xf32>
    %52 = arith.mulf %50, %51 : vector<16x1xf32>
    %cst_33 = arith.constant 2.000000e+00 : f32
    %53 = vector.broadcast %cst_33 : f32 to vector<16x1xf32>
    %54 = arith.subf %53, %52 : vector<16x1xf32>
    %55 = arith.mulf %51, %54 : vector<16x1xf32>
    %cst_34 = arith.constant dense<0.000000e+00> : vector<16x8xf32>
    %56 = tpu.matmul %46, %7, %cst_34 {dimension_numbers = #tpu.dot_dimension_numbers<[1], [0], [0], [1], [0, 0, 1, 1], [], []>} : vector<16x16xf32>, vector<16x8xf32>, vector<16x8xf32> -> vector<16x8xf32>
    %57 = vector.broadcast %55 : vector<16x1xf32> to vector<16x8xf32>
    %58 = arith.mulf %56, %57 : vector<16x8xf32>
    %c0_35 = arith.constant 0 : index
    %c0_36 = arith.constant 0 : index
    %c0_37 = arith.constant 0 : index
    %59 = vector.load %arg8[%c0_35, %c0_36, %c0_37] : memref<1x16x8xf32, #tpu.memory_space<vmem>>, vector<1x16x8xf32>
    %60 = vector.shape_cast %59 : vector<1x16x8xf32> to vector<16x8xf32>
    %61 = vector.shape_cast %58 : vector<16x8xf32> to vector<1x16x8xf32>
    tpu.vector_store %arg8[%c0_35, %c0_36, %c0_37], %61 {strides = array<i32>} : memref<1x16x8xf32, #tpu.memory_space<vmem>>, vector<1x16x8xf32>,
    return
  }
  func.func @transform_0(%arg0: i32, %arg1: i32) -> (i32, i32) {
    %c0_i32 = arith.constant 0 : i32
    %c0_i32_0 = arith.constant 0 : i32
    return %arg1, %c0_i32 : i32, i32
  }
  func.func @transform_1(%arg0: i32, %arg1: i32) -> (i32, i32) {
    %c0_i32 = arith.constant 0 : i32
    %c0_i32_0 = arith.constant 0 : i32
    %c0_i32_1 = arith.constant 0 : i32
    return %c0_i32, %c0_i32_0 : i32, i32
  }
  func.func @transform_2(%arg0: i32, %arg1: i32) -> (i32, i32, i32) {
    %c0_i32 = arith.constant 0 : i32
    %c0_i32_0 = arith.constant 0 : i32
    return %arg0, %arg1, %c0_i32 : i32, i32, i32
  }
  func.func @transform_3(%arg0: i32, %arg1: i32) -> (i32, i32, i32) {
    %c0_i32 = arith.constant 0 : i32
    %c0_i32_0 = arith.constant 0 : i32
    %c0_i32_1 = arith.constant 0 : i32
    return %arg0, %c0_i32, %c0_i32_0 : i32, i32, i32
  }
  func.func @transform_4(%arg0: i32, %arg1: i32) -> (i32, i32, i32) {
    %c0_i32 = arith.constant 0 : i32
    %c0_i32_0 = arith.constant 0 : i32
    %c0_i32_1 = arith.constant 0 : i32
    return %arg0, %c0_i32, %c0_i32_0 : i32, i32, i32
  }
  func.func @transform_5(%arg0: i32, %arg1: i32) -> (i32, i32, i32) {
    %c0_i32 = arith.constant 0 : i32
    %c0_i32_0 = arith.constant 0 : i32
    %c0_i32_1 = arith.constant 0 : i32
    return %arg0, %c0_i32, %c0_i32_0 : i32, i32, i32
  }
  func.func @transform_6(%arg0: i32, %arg1: i32) -> (i32, i32, i32) {
    %c0_i32 = arith.constant 0 : i32
    %c0_i32_0 = arith.constant 0 : i32
    return %arg0, %arg1, %c0_i32 : i32, i32, i32
  }
}

</mosaic_0001>

<llo_original>
// kernel: tpu_custom_call.1
$region0: #{tpu_custom_call.1}
  #allocation0 [shape = 'u32[]', space=smem, size = 0x4, offset = 0x4, fixed_abs, tag = 'smem constant byte address 0x4 - core index']
  #allocation1 [shape = 'u32[144,128]{1,0:T(1,128)}', space=vmem, size = 0x12000, scoped, tag = 'internal scratch']
  %s0 = inlined_call_operand.vmem [shape: f32[16,8], index: 0, kind: input, shape index: {}]
  %s1 = inlined_call_operand.vmem [shape: f32[8,16], index: 1, kind: input, shape index: {}]
  %s2 = inlined_call_operand.vmem [shape: f32[4,16,8], index: 2, kind: input, shape index: {}]
  %s3 = inlined_call_operand.vmem [shape: f32[4,8,16], index: 3, kind: input, shape index: {}]
  %s4 = inlined_call_operand.vmem [shape: f32[4,8,8], index: 4, kind: input, shape index: {}]
  %s5 = inlined_call_operand.vmem [shape: f32[4,16,8], index: 5, kind: input, shape index: {}]
  %s6 = inlined_call_operand.vmem [shape: f32[4,16,8], index: 6, kind: output, shape index: {}]
  %s7 = sld [smem:[#allocation0]]
  $region57: #{tpu_custom_call.1} parent=0
    _
  %s9 = ssub.s32 1, %s7
  %s10 = scalar_select 0, %s9, %s7
  loop: start=0, step=1, limit=6
  $region2: #{tpu_custom_call.1} parent=0 // loop_pre_header
    _
  $region3: #{tpu_custom_call.1} parent=0 // loop_header
    %s12 = sphi 0, %s16
    %p13 = scmp.ge.s32.totalorder %s12, 6
    %s19 = sphi 0, %s31
    %s20 = sphi 0, %s27
    %s21 = sphi 0, %s19
    %s22 = sphi 0, %s20
    %s23 = sphi 0, %s21
    %s24 = sphi 0, %s22
    %s34 = sphi 0, %s36
    %s37 = sphi 0, %s34
    %s38 = sphi 0, %s37
    %s54 = sphi 0, %s38
    %s58 = sphi 0, %s58
    %s60 = sphi 0, %s58
    %s61 = sphi 0, %s60
    %s75 = sphi 0, %s61
    %s83 = sphi 0, %s85
    %s86 = sphi 0, %s83
    %s87 = sphi 0, %s86
    %s103 = sphi 0, %s87
    %s109 = sphi 0, %s111
    %s112 = sphi 0, %s109
    %s113 = sphi 0, %s112
    %s129 = sphi 0, %s113
    %s135 = sphi 0, %s137
    %s138 = sphi 0, %s135
    %s139 = sphi 0, %s138
    %s155 = sphi 0, %s139
    %s161 = sphi 0, %s163
    %s164 = sphi 0, %s161
    %s165 = sphi 0, %s164
    %s181 = sphi 0, %s165
    %s189 = sphi 0, %s191
    %s192 = sphi 0, %s189
    %s193 = sphi 0, %s192
    %s209 = sphi 0, %s193
  $region4: #{tpu_custom_call.1} parent=0 // loop_header_branch
    %15 = sbr.rel (%p13) target = $region8
  $region5: #{tpu_custom_call.1} parent=0 // loop_body
    %s17 = ssub.s32 %s12, 1
    %s18 = ssub.s32 %s12, 2
    %s25 = sadd.s32 1, %s20
    %p26 = scmp.ge.s32.totalorder %s25, 1
    %s27 = scalar_select %p26, 0, %s25
    %s28 = sadd.s32 1, %s19
    %s29 = scalar_select %p26, %s28, %s19
    %p30 = scmp.ge.s32.totalorder %s29, 4
    %s31 = scalar_select %p30, 0, %s29
    %s32 = ssub.s32 %s20, %s27
    %p33 = scmp.eq.s32.totalorder %s32, 0
    %s35 = sadd.s32 %s34, 1
    %s36 = scalar_select %p33, %s34, %s35
    %p39 = pneg %p33
    %p40 = scmp.eq.s32.totalorder %s12, 3
    %p41 = por %p39, %p40
    %p42 = scmp.ne.s32.totalorder %s34, %s37
    %p43 = scmp.eq.s32.totalorder %s12, 0
    %p44 = por %p42, %p43
    %p45 = scmp.ne.s32.totalorder %s34, %s37
    %p46 = scmp.eq.s32.totalorder %s17, 3
    %p47 = por %p45, %p46
    %p48 = scmp.ne.s32.totalorder %s37, %s38
    %p49 = scmp.eq.s32.totalorder %s17, 0
    %p50 = por %p48, %p49
    %p51 = scmp.ne.s32.totalorder %s37, %s38
    %p52 = scmp.eq.s32.totalorder %s18, 3
    %p53 = por %p51, %p52
    %p55 = scmp.ne.s32.totalorder %s38, %s54
    %p56 = scmp.eq.s32.totalorder %s18, 0
    %p57 = por %p55, %p56
    %s59 = sadd.s32 %s58, 1
    %p62 = scmp.eq.s32.totalorder %s12, 3
    %p63 = scmp.ne.s32.totalorder %s58, %s60
    %p64 = scmp.eq.s32.totalorder %s12, 0
    %p65 = por %p63, %p64
    %p66 = scmp.ne.s32.totalorder %s58, %s60
    %p67 = scmp.eq.s32.totalorder %s17, 3
    %p68 = por %p66, %p67
    %p69 = scmp.ne.s32.totalorder %s60, %s61
    %p70 = scmp.eq.s32.totalorder %s17, 0
    %p71 = por %p69, %p70
    %p72 = scmp.ne.s32.totalorder %s60, %s61
    %p73 = scmp.eq.s32.totalorder %s18, 3
    %p74 = por %p72, %p73
    %p76 = scmp.ne.s32.totalorder %s61, %s75
    %p77 = scmp.eq.s32.totalorder %s18, 0
    %p78 = por %p76, %p77
    %s79 = ssub.s32 %s19, %s31
    %s80 = ssub.s32 %s20, %s27
    %s81 = sor.u32 %s79, %s80
    %p82 = scmp.eq.s32.totalorder %s81, 0
    %s84 = sadd.s32 %s83, 1
    %s85 = scalar_select %p82, %s83, %s84
    %p88 = pneg %p82
    %p89 = scmp.eq.s32.totalorder %s12, 3
    %p90 = por %p88, %p89
    %p91 = scmp.ne.s32.totalorder %s83, %s86
    %p92 = scmp.eq.s32.totalorder %s12, 0
    %p93 = por %p91, %p92
    %p94 = scmp.ne.s32.totalorder %s83, %s86
    %p95 = scmp.eq.s32.totalorder %s17, 3
    %p96 = por %p94, %p95
    %p97 = scmp.ne.s32.totalorder %s86, %s87
    %p98 = scmp.eq.s32.totalorder %s17, 0
    %p99 = por %p97, %p98
    %p100 = scmp.ne.s32.totalorder %s86, %s87
    %p101 = scmp.eq.s32.totalorder %s18, 3
    %p102 = por %p100, %p101
    %p104 = scmp.ne.s32.totalorder %s87, %s103
    %p105 = scmp.eq.s32.totalorder %s18, 0
    %p106 = por %p104, %p105
    %s107 = ssub.s32 %s19, %s31
    %p108 = scmp.eq.s32.totalorder %s107, 0
    %s110 = sadd.s32 %s109, 1
    %s111 = scalar_select %p108, %s109, %s110
    %p114 = pneg %p108
    %p115 = scmp.eq.s32.totalorder %s12, 3
    %p116 = por %p114, %p115
    %p117 = scmp.ne.s32.totalorder %s109, %s112
    %p118 = scmp.eq.s32.totalorder %s12, 0
    %p119 = por %p117, %p118
    %p120 = scmp.ne.s32.totalorder %s109, %s112
    %p121 = scmp.eq.s32.totalorder %s17, 3
    %p122 = por %p120, %p121
    %p123 = scmp.ne.s32.totalorder %s112, %s113
    %p124 = scmp.eq.s32.totalorder %s17, 0
    %p125 = por %p123, %p124
    %p126 = scmp.ne.s32.totalorder %s112, %s113
    %p127 = scmp.eq.s32.totalorder %s18, 3
    %p128 = por %p126, %p127
    %p130 = scmp.ne.s32.totalorder %s113, %s129
    %p131 = scmp.eq.s32.totalorder %s18, 0
    %p132 = por %p130, %p131
    %s133 = ssub.s32 %s19, %s31
    %p134 = scmp.eq.s32.totalorder %s133, 0
    %s136 = sadd.s32 %s135, 1
    %s137 = scalar_select %p134, %s135, %s136
    %p140 = pneg %p134
    %p141 = scmp.eq.s32.totalorder %s12, 3
    %p142 = por %p140, %p141
    %p143 = scmp.ne.s32.totalorder %s135, %s138
    %p144 = scmp.eq.s32.totalorder %s12, 0
    %p145 = por %p143, %p144
    %p146 = scmp.ne.s32.totalorder %s135, %s138
    %p147 = scmp.eq.s32.totalorder %s17, 3
    %p148 = por %p146, %p147
    %p149 = scmp.ne.s32.totalorder %s138, %s139
    %p150 = scmp.eq.s32.totalorder %s17, 0
    %p151 = por %p149, %p150
    %p152 = scmp.ne.s32.totalorder %s138, %s139
    %p153 = scmp.eq.s32.totalorder %s18, 3
    %p154 = por %p152, %p153
    %p156 = scmp.ne.s32.totalorder %s139, %s155
    %p157 = scmp.eq.s32.totalorder %s18, 0
    %p158 = por %p156, %p157
    %s159 = ssub.s32 %s19, %s31
    %p160 = scmp.eq.s32.totalorder %s159, 0
    %s162 = sadd.s32 %s161, 1
    %s163 = scalar_select %p160, %s161, %s162
    %p166 = pneg %p160
    %p167 = scmp.eq.s32.totalorder %s12, 3
    %p168 = por %p166, %p167
    %p169 = scmp.ne.s32.totalorder %s161, %s164
    %p170 = scmp.eq.s32.totalorder %s12, 0
    %p171 = por %p169, %p170
    %p172 = scmp.ne.s32.totalorder %s161, %s164
    %p173 = scmp.eq.s32.totalorder %s17, 3
    %p174 = por %p172, %p173
    %p175 = scmp.ne.s32.totalorder %s164, %s165
    %p176 = scmp.eq.s32.totalorder %s17, 0
    %p177 = por %p175, %p176
    %p178 = scmp.ne.s32.totalorder %s164, %s165
    %p179 = scmp.eq.s32.totalorder %s18, 3
    %p180 = por %p178, %p179
    %p182 = scmp.ne.s32.totalorder %s165, %s181
    %p183 = scmp.eq.s32.totalorder %s18, 0
    %p184 = por %p182, %p183
    %s185 = ssub.s32 %s19, %s31
    %s186 = ssub.s32 %s20, %s27
    %s187 = sor.u32 %s185, %s186
    %p188 = scmp.eq.s32.totalorder %s187, 0
    %s190 = sadd.s32 %s189, 1
    %s191 = scalar_select %p188, %s189, %s190
    %p194 = pneg %p188
    %p195 = scmp.eq.s32.totalorder %s12, 3
    %p196 = por %p194, %p195
    %p197 = scmp.ne.s32.totalorder %s189, %s192
    %p198 = scmp.eq.s32.totalorder %s12, 0
    %p199 = por %p197, %p198
    %p200 = scmp.ne.s32.totalorder %s189, %s192
    %p201 = scmp.eq.s32.totalorder %s17, 3
    %p202 = por %p200, %p201
    %p203 = scmp.ne.s32.totalorder %s192, %s193
    %p204 = scmp.eq.s32.totalorder %s17, 0
    %p205 = por %p203, %p204
    %p206 = scmp.ne.s32.totalorder %s192, %s193
    %p207 = scmp.eq.s32.totalorder %s18, 3
    %p208 = por %p206, %p207
    %p210 = scmp.ne.s32.totalorder %s193, %s209
    %p211 = scmp.eq.s32.totalorder %s18, 0
    %p212 = por %p210, %p211
    %p213 = scmp.le.s32.totalorder 1, %s12
    %p214 = scmp.lt.s32.totalorder %s12, 5
    %p215 = pnand %p213, %p214
    %p216 = pneg %p215
    // Predicated region
    $region9: #{tpu_custom_call.1} parent=5 // pred_check
      _
    $region10: #{tpu_custom_call.1} parent=5 // pred_check_branch
      %218 = sbr.rel (%p215) target = $region12
    $region11: #{tpu_custom_call.1} parent=5 // pred_region
      %s219 = ssub.s32 %s12, 1
      // Predicated region
      $region13: #{tpu_custom_call.1} parent=11 // pred_check
        %p220 = pneg %p50
      $region14: #{tpu_custom_call.1} parent=11 // pred_check_branch
        %222 = sbr.rel (%p220) target = $region16
      $region15: #{tpu_custom_call.1} parent=11 // pred_region
        %s223 = smul.u32 2, %s22
        %p224 = scmp.lt.s32.totalorder %s223, 1
        %s225 = scalar_select %p224, %s223, 1
        %s226 = smul.addr %s225, 8
        %s227 = scalar_lea.vmem %s0, %s226
        %s228 = smul.u32 2, %s22
      $region16: #{tpu_custom_call.1} parent=11 // pred_fallthru
        _
      // Predicated region
      $region17: #{tpu_custom_call.1} parent=11 // pred_check
        %p229 = pneg %p71
      $region18: #{tpu_custom_call.1} parent=11 // pred_check_branch
        %231 = sbr.rel (%p229) target = $region20
      $region19: #{tpu_custom_call.1} parent=11 // pred_region
        _
      $region20: #{tpu_custom_call.1} parent=11 // pred_fallthru
        _
    $region12: #{tpu_custom_call.1} parent=5 // pred_fallthru
      _
    %p232 = scmp.lt.s32.totalorder %s12, 4
    // Predicated region
    $region21: #{tpu_custom_call.1} parent=5 // pred_check
      %p233 = pneg %p232
    $region22: #{tpu_custom_call.1} parent=5 // pred_check_branch
      %235 = sbr.rel (%p233) target = $region24
    $region23: #{tpu_custom_call.1} parent=5 // pred_region
      // Predicated region
      $region25: #{tpu_custom_call.1} parent=23 // pred_check
        %p236 = pneg %p93
      $region26: #{tpu_custom_call.1} parent=23 // pred_check_branch
        %238 = sbr.rel (%p236) target = $region28
      $region27: #{tpu_custom_call.1} parent=23 // pred_region
        %s239 = smul.u32 2, %s20
        %p240 = scmp.lt.s32.totalorder %s19, 3
        %s241 = scalar_select %p240, %s19, 3
        %p242 = scmp.lt.s32.totalorder %s239, 1
        %s243 = scalar_select %p242, %s239, 1
        %s244 = smul.addr %s241, 2
        %s245 = sadd.s32 %s243, %s244
        %s246 = smul.addr %s245, 8
        %s247 = scalar_lea.vmem %s2, %s246
        %s248 = smul.u32 2, %s20
      $region28: #{tpu_custom_call.1} parent=23 // pred_fallthru
        _
      // Predicated region
      $region29: #{tpu_custom_call.1} parent=23 // pred_check
        %p249 = pneg %p119
      $region30: #{tpu_custom_call.1} parent=23 // pred_check_branch
        %251 = sbr.rel (%p249) target = $region32
      $region31: #{tpu_custom_call.1} parent=23 // pred_region
        %p252 = scmp.lt.s32.totalorder %s19, 3
        %s253 = scalar_select %p252, %s19, 3
        %s254 = smul.addr %s253, 8
        %s255 = scalar_lea.vmem %s3, %s254
      $region32: #{tpu_custom_call.1} parent=23 // pred_fallthru
        _
      // Predicated region
      $region33: #{tpu_custom_call.1} parent=23 // pred_check
        %p256 = pneg %p145
      $region34: #{tpu_custom_call.1} parent=23 // pred_check_branch
        %258 = sbr.rel (%p256) target = $region36
      $region35: #{tpu_custom_call.1} parent=23 // pred_region
        %p259 = scmp.lt.s32.totalorder %s19, 3
        %s260 = scalar_select %p259, %s19, 3
        %s261 = smul.addr %s260, 8
        %s262 = scalar_lea.vmem %s4, %s261
      $region36: #{tpu_custom_call.1} parent=23 // pred_fallthru
        _
      // Predicated region
      $region37: #{tpu_custom_call.1} parent=23 // pred_check
        %p263 = pneg %p171
      $region38: #{tpu_custom_call.1} parent=23 // pred_check_branch
        %265 = sbr.rel (%p263) target = $region40
      $region39: #{tpu_custom_call.1} parent=23 // pred_region
        %p266 = scmp.lt.s32.totalorder %s19, 3
        %s267 = scalar_select %p266, %s19, 3
        %s268 = smul.addr %s267, 2
        %s269 = smul.addr %s268, 8
        %s270 = scalar_lea.vmem %s5, %s269
      $region40: #{tpu_custom_call.1} parent=23 // pred_fallthru
        _
    $region24: #{tpu_custom_call.1} parent=5 // pred_fallthru
      _
    %p271 = scmp.le.s32.totalorder 1, %s12
    %p272 = scmp.lt.s32.totalorder %s12, 5
    %p273 = pnand %p271, %p272
    %p274 = pneg %p273
    // Predicated region
    $region41: #{tpu_custom_call.1} parent=5 // pred_check
      _
    $region42: #{tpu_custom_call.1} parent=5 // pred_check_branch
      %276 = sbr.rel (%p273) target = $region44
    $region43: #{tpu_custom_call.1} parent=5 // pred_region
      %s277 = ssub.s32 %s12, 1
      %s278 = smul.u32 2, %s22
      %p279 = scmp.lt.s32.totalorder %s278, 1
      %s280 = scalar_select %p279, %s278, 1
      %s281 = smul.addr %s280, 8
      %s282 = scalar_lea.vmem %s0, %s281
      %p283 = pneg %p50
      %p284 = pneg %p47
      %p285 = pneg %p71
      %p286 = pneg %p68
      %s287 = smul.u32 2, %s22
      %p288 = scmp.lt.s32.totalorder %s21, 3
      %s289 = scalar_select %p288, %s21, 3
      %p290 = scmp.lt.s32.totalorder %s287, 1
      %s291 = scalar_select %p290, %s287, 1
      %s292 = smul.addr %s289, 2
      %s293 = sadd.s32 %s291, %s292
      %s294 = smul.addr %s293, 8
      %s295 = scalar_lea.vmem %s2, %s294
      %p296 = pneg %p99
      %p297 = pneg %p96
      %p298 = scmp.lt.s32.totalorder %s21, 3
      %s299 = scalar_select %p298, %s21, 3
      %s300 = smul.addr %s299, 8
      %s301 = scalar_lea.vmem %s3, %s300
      %p302 = pneg %p125
      %p303 = pneg %p122
      %p304 = scmp.lt.s32.totalorder %s21, 3
      %s305 = scalar_select %p304, %s21, 3
      %s306 = smul.addr %s305, 8
      %s307 = scalar_lea.vmem %s4, %s306
      %p308 = pneg %p151
      %p309 = pneg %p148
      %p310 = scmp.lt.s32.totalorder %s21, 3
      %s311 = scalar_select %p310, %s21, 3
      %s312 = smul.addr %s311, 2
      %s313 = smul.addr %s312, 8
      %s314 = scalar_lea.vmem %s5, %s313
      %p315 = pneg %p177
      %p316 = pneg %p174
      %p317 = pneg %p205
      %p318 = pneg %p202
      %s319 = smul.u32 2, %s22
      %p320 = scmp.lt.s32.totalorder %s21, 3
      %s321 = scalar_select %p320, %s21, 3
      %p322 = scmp.lt.s32.totalorder %s319, 1
      %s323 = scalar_select %p322, %s319, 1
      %s324 = smul.addr %s321, 2
      %s325 = sadd.s32 %s323, %s324
      %s326 = smul.addr %s325, 8
      %s327 = scalar_lea.vmem %s6, %s326
      %s328 = smul.u32 2, %s22
      %p329 = scmp.lt.s32.totalorder %s328, 1
      %s330 = scalar_select %p329, %s328, 1
      %s331 = smul.addr %s330, 8
      %s332 = scalar_lea.vmem %s0, %s331
      %s333 = smul.u32 2, %s22
      %s334 = smul.u32 2, %s22
      %p335 = scmp.lt.s32.totalorder %s21, 3
      %s336 = scalar_select %p335, %s21, 3
      %p337 = scmp.lt.s32.totalorder %s334, 1
      %s338 = scalar_select %p337, %s334, 1
      %s339 = smul.addr %s336, 2
      %s340 = sadd.s32 %s338, %s339
      %s341 = smul.addr %s340, 8
      %s342 = scalar_lea.vmem %s2, %s341
      %s343 = smul.u32 2, %s22
      %p344 = scmp.lt.s32.totalorder %s21, 3
      %s345 = scalar_select %p344, %s21, 3
      %s346 = smul.addr %s345, 8
      %s347 = scalar_lea.vmem %s3, %s346
      %p348 = scmp.lt.s32.totalorder %s21, 3
      %s349 = scalar_select %p348, %s21, 3
      %s350 = smul.addr %s349, 8
      %s351 = scalar_lea.vmem %s4, %s350
      %p352 = scmp.lt.s32.totalorder %s21, 3
      %s353 = scalar_select %p352, %s21, 3
      %s354 = smul.addr %s353, 2
      %s355 = smul.addr %s354, 8
      %s356 = scalar_lea.vmem %s5, %s355
      %s357 = smul.u32 2, %s22
      %p358 = scmp.lt.s32.totalorder %s21, 3
      %s359 = scalar_select %p358, %s21, 3
      %p360 = scmp.lt.s32.totalorder %s357, 1
      %s361 = scalar_select %p360, %s357, 1
      %s362 = smul.addr %s359, 2
      %s363 = sadd.s32 %s361, %s362
      %s364 = smul.addr %s363, 8
      %s365 = scalar_lea.vmem %s6, %s364
      %s366 = smul.u32 2, %s22
      %v367 = vld [vmem:[%s342] sm:$0xff]
      %v368 = vld [vmem:[%s342 + $0x8] sm:$0xff]
      %v369 = vld [vmem:[%s347] sm:$0xff]
      %v370 = vld [vmem:[%s351] sm:$0xff]
      %v371 = vld [vmem:[%s356] sm:$0xff]
      %v372 = vld [vmem:[%s356 + $0x8] sm:$0xff]
      %v373 = vld [vmem:[%s1] sm:$0xff]
      %v374 = vld [vmem:[%s332] sm:$0xff]
      %v375 = vld [vmem:[%s332 + $0x8] sm:$0xff]
      %vm376 = vcmask 64512
      %v378 = vsel %vm376, %v367, 0
      %v381 = vsel %vm376, %v368, 0
      %383 = vmatprep.subr.mxu0 0.0
      %384 = vmatpush1.msra.mxu0 %v369
      %385 = vmatprep.subr.mxu0 0.0
      %386 = vmatpush1.msra.mxu0 0.0
      %387 = vmatprep.subr.mxu0 0.0
      %388 = vmatpush1.msra.mxu0 0.0
      %389 = vmatprep.subr.mxu0 0.0
      %390 = vmatpush1.msra.mxu0 0.0
      %391 = vmatprep.subr.mxu0 0.0
      %392 = vmatpush1.msra.mxu0 0.0
      %393 = vmatprep.subr.mxu0 0.0
      %394 = vmatpush1.msra.mxu0 0.0
      %395 = vmatprep.subr.mxu0 0.0
      %396 = vmatpush1.msra.mxu0 0.0
      %397 = vmatprep.subr.mxu0 0.0
      %398 = vmatpush1.msra.mxu0 0.0
      %399 = vmatprep.subr.mxu0 0.0
      %400 = vmatpush1.msra.mxu0 0.0
      %401 = vmatprep.subr.mxu0 0.0
      %402 = vmatpush1.msra.mxu0 0.0
      %403 = vmatprep.subr.mxu0 0.0
      %404 = vmatpush1.msra.mxu0 0.0
      %405 = vmatprep.subr.mxu0 0.0
      %406 = vmatpush1.msra.mxu0 0.0
      %407 = vmatprep.subr.mxu0 0.0
      %408 = vmatpush1.msra.mxu0 0.0
      %409 = vmatprep.subr.mxu0 0.0
      %410 = vmatpush1.msra.mxu0 0.0
      %411 = vmatprep.subr.mxu0 0.0
      %412 = vmatpush1.msra.mxu0 0.0
      %413 = vmatprep.subr.mxu0 0.0
      %414 = vmatpush1.msra.mxu0 0.0
      %415 = vmatprep.subr.mxu0 0.0
      %416 = vmatpush1.msra.mxu0 0.0
      %417 = vmatprep.subr.mxu0 0.0
      %418 = vmatpush1.msra.mxu0 0.0
      %419 = vmatprep.subr.mxu0 0.0
      %420 = vmatpush1.msra.mxu0 0.0
      %421 = vmatprep.subr.mxu0 0.0
      %422 = vmatpush1.msra.mxu0 0.0
      %423 = vmatprep.subr.mxu0 0.0
      %424 = vmatpush1.msra.mxu0 0.0
      %425 = vmatprep.subr.mxu0 0.0
      %426 = vmatpush1.msra.mxu0 0.0
      %427 = vmatprep.subr.mxu0 0.0
      %428 = vmatpush1.msra.mxu0 0.0
      %429 = vmatprep.subr.mxu0 0.0
      %430 = vmatpush1.msra.mxu0 0.0
      %431 = vmatprep.subr.mxu0 0.0
      %432 = vmatpush1.msra.mxu0 0.0
      %433 = vmatprep.subr.mxu0 0.0
      %434 = vmatpush1.msra.mxu0 0.0
      %435 = vmatprep.subr.mxu0 0.0
      %436 = vmatpush1.msra.mxu0 0.0
      %437 = vmatprep.subr.mxu0 0.0
      %438 = vmatpush1.msra.mxu0 0.0
      %439 = vmatprep.subr.mxu0 0.0
      %440 = vmatpush1.msra.mxu0 0.0
      %441 = vmatprep.subr.mxu0 0.0
      %442 = vmatpush1.msra.mxu0 0.0
      %443 = vmatprep.subr.mxu0 0.0
      %444 = vmatpush1.msra.mxu0 0.0
      %445 = vmatprep.subr.mxu0 0.0
      %446 = vmatpush1.msra.mxu0 0.0
      %447 = vmatprep.mubr.f32.mxu0 0.0
      %448 = vmatmul.mubr.f32.gmra.mrb[0].mxu0 %v378
      %v449 = vpop.f32.mrb[0].mxu0
      %v450 = vadd.f32 0.0, %v449
      %v451 = vpop.f32.mrb[0].mxu0
      %452 = vmatprep.mubr.f32.mxu0 0.0
      %453 = vmatmul.mubr.f32.gmra.mrb[0].mxu0 %v381
      %v454 = vpop.f32.mrb[0].mxu0
      %v455 = vadd.f32 0.0, %v454
      %v456 = vpop.f32.mrb[0].mxu0
      %457 = vdwg.mxu0
      %458 = vmatprep.subr.mxu0 0.0
      %459 = vmatpush1.msra.mxu0 %v370
      %460 = vmatprep.subr.mxu0 0.0
      %461 = vmatpush1.msra.mxu0 0.0
      %462 = vmatprep.subr.mxu0 0.0
      %463 = vmatpush1.msra.mxu0 0.0
      %464 = vmatprep.subr.mxu0 0.0
      %465 = vmatpush1.msra.mxu0 0.0
      %466 = vmatprep.subr.mxu0 0.0
      %467 = vmatpush1.msra.mxu0 0.0
      %468 = vmatprep.subr.mxu0 0.0
      %469 = vmatpush1.msra.mxu0 0.0
      %470 = vmatprep.subr.mxu0 0.0
      %471 = vmatpush1.msra.mxu0 0.0
      %472 = vmatprep.subr.mxu0 0.0
      %473 = vmatpush1.msra.mxu0 0.0
      %474 = vmatprep.subr.mxu0 0.0
      %475 = vmatpush1.msra.mxu0 0.0
      %476 = vmatprep.subr.mxu0 0.0
      %477 = vmatpush1.msra.mxu0 0.0
      %478 = vmatprep.subr.mxu0 0.0
      %479 = vmatpush1.msra.mxu0 0.0
      %480 = vmatprep.subr.mxu0 0.0
      %481 = vmatpush1.msra.mxu0 0.0
      %482 = vmatprep.subr.mxu0 0.0
      %483 = vmatpush1.msra.mxu0 0.0
      %484 = vmatprep.subr.mxu0 0.0
      %485 = vmatpush1.msra.mxu0 0.0
      %486 = vmatprep.subr.mxu0 0.0
      %487 = vmatpush1.msra.mxu0 0.0
      %488 = vmatprep.subr.mxu0 0.0
      %489 = vmatpush1.msra.mxu0 0.0
      %490 = vmatprep.subr.mxu0 0.0
      %491 = vmatpush1.msra.mxu0 0.0
      %492 = vmatprep.subr.mxu0 0.0
      %493 = vmatpush1.msra.mxu0 0.0
      %494 = vmatprep.subr.mxu0 0.0
      %495 = vmatpush1.msra.mxu0 0.0
      %496 = vmatprep.subr.mxu0 0.0
      %497 = vmatpush1.msra.mxu0 0.0
      %498 = vmatprep.subr.mxu0 0.0
      %499 = vmatpush1.msra.mxu0 0.0
      %500 = vmatprep.subr.mxu0 0.0
      %501 = vmatpush1.msra.mxu0 0.0
      %502 = vmatprep.subr.mxu0 0.0
      %503 = vmatpush1.msra.mxu0 0.0
      %504 = vmatprep.subr.mxu0 0.0
      %505 = vmatpush1.msra.mxu0 0.0
      %506 = vmatprep.subr.mxu0 0.0
      %507 = vmatpush1.msra.mxu0 0.0
      %508 = vmatprep.subr.mxu0 0.0
      %509 = vmatpush1.msra.mxu0 0.0
      %510 = vmatprep.subr.mxu0 0.0
      %511 = vmatpush1.msra.mxu0 0.0
      %512 = vmatprep.subr.mxu0 0.0
      %513 = vmatpush1.msra.mxu0 0.0
      %514 = vmatprep.subr.mxu0 0.0
      %515 = vmatpush1.msra.mxu0 0.0
      %516 = vmatprep.subr.mxu0 0.0
      %517 = vmatpush1.msra.mxu0 0.0
      %518 = vmatprep.subr.mxu0 0.0
      %519 = vmatpush1.msra.mxu0 0.0
      %520 = vmatprep.subr.mxu0 0.0
      %521 = vmatpush1.msra.mxu0 0.0
      %522 = vmatprep.mubr.f32.mxu0 0.0
      %523 = vmatmul.mubr.f32.gmra.mrb[0].mxu0 %v378
      %v524 = vpop.f32.mrb[0].mxu0
      %v525 = vadd.f32 0.0, %v524
      %v526 = vpop.f32.mrb[0].mxu0
      %527 = vmatprep.mubr.f32.mxu0 0.0
      %528 = vmatmul.mubr.f32.gmra.mrb[0].mxu0 %v381
      %v529 = vpop.f32.mrb[0].mxu0
      %v530 = vadd.f32 0.0, %v529
      %v531 = vpop.f32.mrb[0].mxu0
      %532 = vdwg.mxu0
      %vm533 = vcmp.gt.f32.partialorder %v374, 0.0
      %vm534 = vcmp.gt.f32.partialorder %v375, 0.0
      %v535 = vsel %vm533, %v525, -1e+30
      %v536 = vsel %vm534, %v530, -1e+30
      %v537 = vsel %vm376, %v535, -inf
      %538 = vmax.xlane.f32.xlu0 %v537
      %v539 = vpop.xlane.xlu0 %538
      %v540 = vsel %vm376, %v536, -inf
      %541 = vmax.xlane.f32.xlu0 %v540
      %v542 = vpop.xlane.xlu0 %541
      %vm543 = vcmp.gt.f32.partialorder %v539, -5e+29
      %vm544 = vcmp.gt.f32.partialorder %v542, -5e+29
      %v545 = vsel %vm543, %v539, 0.0
      %v546 = vsel %vm544, %v542, 0.0
      %v547 = vsub.f32 %v525, %v545
      %v548 = vsub.f32 %v530, %v546
      %v549 = vmin.f32 %v547, 0.0
      %v550 = vmin.f32 %v548, 0.0
      %v551 = vmul.f32 %v549, 1.442695
      %v552 = vpow.pop %v551
      %v553 = vmul.f32 %v550, 1.442695
      %v554 = vpow.pop %v553
      %v555 = vmul.f32 %v552, %v374
      %v556 = vmul.f32 %v554, %v375
      %v558 = vsel %vm376, %v555, 0
      %v561 = vsel %vm376, %v556, 0
      %563 = vmatprep.subr.mxu0 0.0
      %564 = vmatpush1.msra.mxu0 %v373
      %565 = vmatprep.subr.mxu0 0.0
      %566 = vmatpush1.msra.mxu0 0.0
      %567 = vmatprep.subr.mxu0 0.0
      %568 = vmatpush1.msra.mxu0 0.0
      %569 = vmatprep.subr.mxu0 0.0
      %570 = vmatpush1.msra.mxu0 0.0
      %571 = vmatprep.subr.mxu0 0.0
      %572 = vmatpush1.msra.mxu0 0.0
      %573 = vmatprep.subr.mxu0 0.0
      %574 = vmatpush1.msra.mxu0 0.0
      %575 = vmatprep.subr.mxu0 0.0
      %576 = vmatpush1.msra.mxu0 0.0
      %577 = vmatprep.subr.mxu0 0.0
      %578 = vmatpush1.msra.mxu0 0.0
      %579 = vmatprep.subr.mxu0 0.0
      %580 = vmatpush1.msra.mxu0 0.0
      %581 = vmatprep.subr.mxu0 0.0
      %582 = vmatpush1.msra.mxu0 0.0
      %583 = vmatprep.subr.mxu0 0.0
      %584 = vmatpush1.msra.mxu0 0.0
      %585 = vmatprep.subr.mxu0 0.0
      %586 = vmatpush1.msra.mxu0 0.0
      %587 = vmatprep.subr.mxu0 0.0
      %588 = vmatpush1.msra.mxu0 0.0
      %589 = vmatprep.subr.mxu0 0.0
      %590 = vmatpush1.msra.mxu0 0.0
      %591 = vmatprep.subr.mxu0 0.0
      %592 = vmatpush1.msra.mxu0 0.0
      %593 = vmatprep.subr.mxu0 0.0
      %594 = vmatpush1.msra.mxu0 0.0
      %595 = vmatprep.subr.mxu0 0.0
      %596 = vmatpush1.msra.mxu0 0.0
      %597 = vmatprep.subr.mxu0 0.0
      %598 = vmatpush1.msra.mxu0 0.0
      %599 = vmatprep.subr.mxu0 0.0
      %600 = vmatpush1.msra.mxu0 0.0
      %601 = vmatprep.subr.mxu0 0.0
      %602 = vmatpush1.msra.mxu0 0.0
      %603 = vmatprep.subr.mxu0 0.0
      %604 = vmatpush1.msra.mxu0 0.0
      %605 = vmatprep.subr.mxu0 0.0
      %606 = vmatpush1.msra.mxu0 0.0
      %607 = vmatprep.subr.mxu0 0.0
      %608 = vmatpush1.msra.mxu0 0.0
      %609 = vmatprep.subr.mxu0 0.0
      %610 = vmatpush1.msra.mxu0 0.0
      %611 = vmatprep.subr.mxu0 0.0
      %612 = vmatpush1.msra.mxu0 0.0
      %613 = vmatprep.subr.mxu0 0.0
      %614 = vmatpush1.msra.mxu0 0.0
      %615 = vmatprep.subr.mxu0 0.0
      %616 = vmatpush1.msra.mxu0 0.0
      %617 = vmatprep.subr.mxu0 0.0
      %618 = vmatpush1.msra.mxu0 0.0
      %619 = vmatprep.subr.mxu0 0.0
      %620 = vmatpush1.msra.mxu0 0.0
      %621 = vmatprep.subr.mxu0 0.0
      %622 = vmatpush1.msra.mxu0 0.0
      %623 = vmatprep.subr.mxu0 0.0
      %624 = vmatpush1.msra.mxu0 0.0
      %625 = vmatprep.subr.mxu0 0.0
      %626 = vmatpush1.msra.mxu0 0.0
      %627 = vmatprep.mubr.f32.mxu0 0.0
      %628 = vmatmul.mubr.f32.gmra.mrb[0].mxu0 %v558
      %v629 = vpop.f32.mrb[0].mxu0
      %v630 = vadd.f32 0.0, %v629
      %v631 = vpop.f32.mrb[0].mxu0
      %632 = vmatprep.mubr.f32.mxu0 0.0
      %633 = vmatmul.mubr.f32.gmra.mrb[0].mxu0 %v561
      %v634 = vpop.f32.mrb[0].mxu0
      %v635 = vadd.f32 0.0, %v634
      %v636 = vpop.f32.mrb[0].mxu0
      %637 = vdwg.mxu0
      %vm638 = vcmp.gt.f32.partialorder %v630, 0.0
      %vm639 = vcmp.gt.f32.partialorder %v635, 0.0
      %v640 = vsel %vm638, %v450, -1e+30
      %v641 = vsel %vm639, %v455, -1e+30
      %vm642 = vcmask 130048
      %v643 = vsel %vm642, %v640, -inf
      %644 = vmax.xlane.f32.xlu0 %v643
      %v645 = vpop.xlane.xlu0 %644
      %v646 = vsel %vm642, %v641, -inf
      %647 = vmax.xlane.f32.xlu0 %v646
      %v648 = vpop.xlane.xlu0 %647
      %vm649 = vcmp.gt.f32.partialorder %v645, -5e+29
      %vm650 = vcmp.gt.f32.partialorder %v648, -5e+29
      %v651 = vsel %vm649, %v645, 0.0
      %v652 = vsel %vm650, %v648, 0.0
      %v653 = vsub.f32 %v450, %v651
      %v654 = vsub.f32 %v455, %v652
      %v655 = vmin.f32 %v653, 0.0
      %v656 = vmin.f32 %v654, 0.0
      %v657 = vmul.f32 %v655, 1.442695
      %v658 = vpow.pop %v657
      %v659 = vmul.f32 %v656, 1.442695
      %v660 = vpow.pop %v659
      %v661 = vmul.f32 %v658, %v630
      %v662 = vmul.f32 %v660, %v635
      %v663 = vsel %vm642, %v661, 0.0
      %664 = vadd.xlane.f32.xlu0 %v663
      %v665 = vpop.xlane.xlu0 %664
      %v666 = vsel %vm642, %v662, 0.0
      %667 = vadd.xlane.f32.xlu0 %v666
      %v668 = vpop.xlane.xlu0 %667
      %v669 = vmax.f32 %v665, 1e-30
      %v670 = vmax.f32 %v668, 1e-30
      %v671 = vrcp.pop %v669
      %v672 = vrcp.pop %v670
      %v673 = vmul.f32 %v669, %v671
      %v674 = vmul.f32 %v670, %v672
      %v675 = vsub.f32 2.0, %v673
      %v676 = vsub.f32 2.0, %v674
      %v677 = vmul.f32 %v671, %v675
      %v678 = vmul.f32 %v672, %v676
      %v680 = vsel %vm642, %v661, 0
      %v683 = vsel %vm642, %v662, 0
      %685 = vmatprep.subr.mxu0 0.0
      %686 = vmatpush1.msra.mxu0 %v371
      %687 = vmatprep.subr.mxu0 0.0
      %688 = vmatpush1.msra.mxu0 %v372
      %689 = vmatprep.subr.mxu0 0.0
      %690 = vmatpush1.msra.mxu0 0.0
      %691 = vmatprep.subr.mxu0 0.0
      %692 = vmatpush1.msra.mxu0 0.0
      %693 = vmatprep.subr.mxu0 0.0
      %694 = vmatpush1.msra.mxu0 0.0
      %695 = vmatprep.subr.mxu0 0.0
      %696 = vmatpush1.msra.mxu0 0.0
      %697 = vmatprep.subr.mxu0 0.0
      %698 = vmatpush1.msra.mxu0 0.0
      %699 = vmatprep.subr.mxu0 0.0
      %700 = vmatpush1.msra.mxu0 0.0
      %701 = vmatprep.subr.mxu0 0.0
      %702 = vmatpush1.msra.mxu0 0.0
      %703 = vmatprep.subr.mxu0 0.0
      %704 = vmatpush1.msra.mxu0 0.0
      %705 = vmatprep.subr.mxu0 0.0
      %706 = vmatpush1.msra.mxu0 0.0
      %707 = vmatprep.subr.mxu0 0.0
      %708 = vmatpush1.msra.mxu0 0.0
      %709 = vmatprep.subr.mxu0 0.0
      %710 = vmatpush1.msra.mxu0 0.0
      %711 = vmatprep.subr.mxu0 0.0
      %712 = vmatpush1.msra.mxu0 0.0
      %713 = vmatprep.subr.mxu0 0.0
      %714 = vmatpush1.msra.mxu0 0.0
      %715 = vmatprep.subr.mxu0 0.0
      %716 = vmatpush1.msra.mxu0 0.0
      %717 = vmatprep.subr.mxu0 0.0
      %718 = vmatpush1.msra.mxu0 0.0
      %719 = vmatprep.subr.mxu0 0.0
      %720 = vmatpush1.msra.mxu0 0.0
      %721 = vmatprep.subr.mxu0 0.0
      %722 = vmatpush1.msra.mxu0 0.0
      %723 = vmatprep.subr.mxu0 0.0
      %724 = vmatpush1.msra.mxu0 0.0
      %725 = vmatprep.subr.mxu0 0.0
      %726 = vmatpush1.msra.mxu0 0.0
      %727 = vmatprep.subr.mxu0 0.0
      %728 = vmatpush1.msra.mxu0 0.0
      %729 = vmatprep.subr.mxu0 0.0
      %730 = vmatpush1.msra.mxu0 0.0
      %731 = vmatprep.subr.mxu0 0.0
      %732 = vmatpush1.msra.mxu0 0.0
      %733 = vmatprep.subr.mxu0 0.0
      %734 = vmatpush1.msra.mxu0 0.0
      %735 = vmatprep.subr.mxu0 0.0
      %736 = vmatpush1.msra.mxu0 0.0
      %737 = vmatprep.subr.mxu0 0.0
      %738 = vmatpush1.msra.mxu0 0.0
      %739 = vmatprep.subr.mxu0 0.0
      %740 = vmatpush1.msra.mxu0 0.0
      %741 = vmatprep.subr.mxu0 0.0
      %742 = vmatpush1.msra.mxu0 0.0
      %743 = vmatprep.subr.mxu0 0.0
      %744 = vmatpush1.msra.mxu0 0.0
      %745 = vmatprep.subr.mxu0 0.0
      %746 = vmatpush1.msra.mxu0 0.0
      %747 = vmatprep.subr.mxu0 0.0
      %748 = vmatpush1.msra.mxu0 0.0
      %749 = vmatprep.mubr.f32.mxu0 0.0
      %750 = vmatmul.mubr.f32.gmra.mrb[0].mxu0 %v680
      %v751 = vpop.f32.mrb[0].mxu0
      %v752 = vadd.f32 0.0, %v751
      %v753 = vpop.f32.mrb[0].mxu0
      %754 = vmatprep.mubr.f32.mxu0 0.0
      %755 = vmatmul.mubr.f32.gmra.mrb[0].mxu0 %v683
      %v756 = vpop.f32.mrb[0].mxu0
      %v757 = vadd.f32 0.0, %v756
      %v758 = vpop.f32.mrb[0].mxu0
      %759 = vdwg.mxu0
      %v760 = vmul.f32 %v752, %v677
      %v761 = vmul.f32 %v757, %v678
      %762 = vst.msk [vmem:[%s365] sm:$0xff] %vm376, %v760
      %763 = vst.msk [vmem:[%s365 + $0x8] sm:$0xff] %vm376, %v761
      %s764 = smul.u32 2, %s22
      %p765 = scmp.lt.s32.totalorder %s21, 3
      %s766 = scalar_select %p765, %s21, 3
      %p767 = scmp.lt.s32.totalorder %s764, 1
      %s768 = scalar_select %p767, %s764, 1
      %s769 = smul.addr %s766, 2
      %s770 = sadd.s32 %s768, %s769
      %s771 = smul.addr %s770, 8
      %s772 = scalar_lea.vmem %s6, %s771
      // Predicated region
      $region45: #{tpu_custom_call.1} parent=43 // pred_check
        %p773 = pneg %p202
      $region46: #{tpu_custom_call.1} parent=43 // pred_check_branch
        %775 = sbr.rel (%p773) target = $region48
      $region47: #{tpu_custom_call.1} parent=43 // pred_region
        %s776 = smul.u32 2, %s22
      $region48: #{tpu_custom_call.1} parent=43 // pred_fallthru
        _
    $region44: #{tpu_custom_call.1} parent=5 // pred_fallthru
      _
    %p777 = scmp.le.s32.totalorder 2, %s12
    // Predicated region
    $region49: #{tpu_custom_call.1} parent=5 // pred_check
      %p778 = pneg %p777
    $region50: #{tpu_custom_call.1} parent=5 // pred_check_branch
      %780 = sbr.rel (%p778) target = $region52
    $region51: #{tpu_custom_call.1} parent=5 // pred_region
      %s781 = ssub.s32 %s12, 2
      // Predicated region
      $region53: #{tpu_custom_call.1} parent=51 // pred_check
        %p782 = pneg %p208
      $region54: #{tpu_custom_call.1} parent=51 // pred_check_branch
        %784 = sbr.rel (%p782) target = $region56
      $region55: #{tpu_custom_call.1} parent=51 // pred_region
        %s785 = smul.u32 2, %s24
        %p786 = scmp.lt.s32.totalorder %s23, 3
        %s787 = scalar_select %p786, %s23, 3
        %p788 = scmp.lt.s32.totalorder %s785, 1
        %s789 = scalar_select %p788, %s785, 1
        %s790 = smul.addr %s787, 2
        %s791 = sadd.s32 %s789, %s790
        %s792 = smul.addr %s791, 8
        %s793 = scalar_lea.vmem %s6, %s792
      $region56: #{tpu_custom_call.1} parent=51 // pred_fallthru
        _
    $region52: #{tpu_custom_call.1} parent=5 // pred_fallthru
      _
  $region6: #{tpu_custom_call.1} parent=0 // loop_footer
    %s16 = sadd.s32 1, %s12
  $region7: #{tpu_custom_call.1} parent=0 // loop_footer_branch
    %11 = sbr.rel target = $region3
  $region8: #{tpu_custom_call.1} parent=0 // loop_exit
    _

</llo_original>
